<compile_context>
chip_gen: v7x
topology: tpu7x:2x2x1
jax: 0.10.0
libtpu: 0.0.40
codegen_flags: <defaults>
</compile_context>

<pallas_src>
import functools

import jax
import jax.numpy as jnp
from jax import lax
from jax.experimental import pallas as pl
from jax.experimental.pallas import tpu as pltpu


def _balanced_softmax_kernel(logit_ref, target_ref, logadj_ref, out_ref, *,
                             block_rows, n_rows):
    # Cast to f32 inside the kernel (input may be bf16 -> half the HBM traffic).
    x = logit_ref[...].astype(jnp.float32)                  # [TN, C]
    x = x + logadj_ref[...]                                 # + log class prior ([1, C] bcast)
    t = target_ref[...]                                     # [TN, 1] i32

    # Numerically-stable log-softmax along the class (lane) axis.
    m = jnp.max(x, axis=-1, keepdims=True)
    z = x - m
    lse = jnp.log(jnp.sum(jnp.exp(z), axis=-1, keepdims=True))
    logp = z - lse                                          # [TN, C]

    # Gather-via-select of the target column, fused with the row-validity mask
    # (padded rows of a partial tile must not contribute -- could be NaN).
    cols = lax.broadcasted_iota(jnp.int32, x.shape, 1)      # [TN, C]
    rows = lax.broadcasted_iota(jnp.int32, x.shape, 0)      # [TN, C]
    row_ok = (pl.program_id(0) * block_rows + rows) < n_rows
    pick = (cols == t) & row_ok                             # [TN, C]
    contrib = jnp.where(pick, -logp, 0.0)                   # [TN, C]

    # Per-class partial NLL sum for this row tile (sublane reduce only; the
    # final tiny reduce over (nb, 1, C) partials happens in the JAX wrapper).
    out_ref[...] = jnp.sum(contrib, axis=0, keepdims=True)[None]   # [1, 1, C]


def _choose_block_rows(n, c, itemsize, vmem_budget_bytes=8 * 1024 * 1024):
    # Keep a double-buffered (TN, C) logit tile within a budget that fits the
    # default scoped VMEM on every generation (v5e 16 MiB ... v7x 32 MiB).
    rows = vmem_budget_bytes // max(1, 2 * c * itemsize)
    rows = max(8, min(1024, rows))
    rows = (rows // 8) * 8
    return rows


def balanced_softmax_loss(logit, target, log_cls_num, *, block_rows=None):
    """logit: [N, C] float (bf16/f32), target: [N] int, log_cls_num: [C] float."""
    n, c = logit.shape
    itemsize = jnp.dtype(logit.dtype).itemsize

    if block_rows is None:
        block_rows = _choose_block_rows(n, c, itemsize)
    if n <= block_rows:
        block_rows = n                      # single tile; full-dim block is always legal
    nb = pl.cdiv(n, block_rows)

    target2d = target.astype(jnp.int32).reshape(n, 1)
    adj2d = log_cls_num.astype(jnp.float32).reshape(1, c)

    kernel = functools.partial(_balanced_softmax_kernel,
                               block_rows=block_rows, n_rows=n)

    partials = pl.pallas_call(
        kernel,
        out_shape=jax.ShapeDtypeStruct((nb, 1, c), jnp.float32),
        grid=(nb,),
        in_specs=[
            pl.BlockSpec((block_rows, c), lambda i: (i, 0)),   # row tile of logits
            pl.BlockSpec((block_rows, 1), lambda i: (i, 0)),   # matching targets
            pl.BlockSpec((1, c), lambda i: (0, 0)),            # log prior, resident
        ],
        out_specs=pl.BlockSpec((1, 1, c), lambda i: (i, 0, 0)),
        compiler_params=pltpu.CompilerParams(
            dimension_semantics=("parallel",),
        ),
        cost_estimate=pl.CostEstimate(
            flops=8 * n * c,
            transcendentals=n * c,
            bytes_accessed=n * c * itemsize + n * 4 + c * 4 + nb * c * 4,
        ),
    )(logit, target2d, adj2d)

    # Tiny final reduction (nb * C f32 values) + mean over the batch.
    return jnp.sum(partials) / n


def make_log_cls_num(cls_num_list):
    cls_num = jnp.asarray(cls_num_list, dtype=jnp.float32)
    return jnp.log(cls_num / jnp.sum(cls_num))


if __name__ == "__main__":
    key = jax.random.PRNGKey(0)
    N, C = 60, 128          # N deliberately NOT a multiple of the 16-row tile

    # Deterministic long-tailed class-count list of length C.
    cls_num_list = 1000.0 / (jnp.arange(C, dtype=jnp.float32) + 1.0)
    log_cls_num = make_log_cls_num(cls_num_list)

    k1, k2 = jax.random.split(key)
    logit = jax.random.normal(k1, (N, C), dtype=jnp.bfloat16)   # bf16 stays bf16 on the wire
    target = jax.random.randint(k2, (N,), 0, C, dtype=jnp.int32)

    # Small block_rows to exercise the multi-tile grid + partial-tile masking.
    loss = balanced_softmax_loss(logit, target, log_cls_num, block_rows=16)
    loss = jax.block_until_ready(loss)

    # Pure-JAX reference (same math as the PyTorch module's forward).
    logit_f32 = logit.astype(jnp.float32)
    logp_ref = jax.nn.log_softmax(logit_f32 + log_cls_num[None, :], axis=-1)
    nll_ref = -jnp.take_along_axis(logp_ref, target[:, None], axis=-1)[:, 0]
    loss_ref = jnp.mean(nll_ref)

    assert jnp.allclose(loss, loss_ref, rtol=1e-5, atol=1e-5), (loss, loss_ref)
    print("KERNEL_OK")
</pallas_src>

<mosaic_0001>
module attributes {stable_mosaic.version = 11 : i64} {
  func.func @_balanced_softmax_kernel(%arg0: i32, %arg1: memref<16x128xbf16, #tpu.memory_space<vmem>>, %arg2: memref<16x1xi32, #tpu.memory_space<vmem>>, %arg3: memref<1x128xf32, #tpu.memory_space<vmem>>, %arg4: memref<1x1x128xf32, #tpu.memory_space<vmem>>) attributes {dimension_semantics = [#tpu.dimension_semantics<parallel>], iteration_bounds = array<i64: 4>, scalar_prefetch = 0 : i64, scratch_operands = 0 : i64, tpu.core_type = #tpu.core_type<tc>, window_params = [{transform_indices = @transform_0, window_bounds = array<i64: 16, 128>}, {transform_indices = @transform_1, window_bounds = array<i64: 16, 1>}, {pipeline_mode = #tpu.pipeline_mode<synchronous>, transform_indices = @transform_2, window_bounds = array<i64: 1, 128>}, {transform_indices = @transform_3, window_bounds = array<i64: 1, 1, 128>}]} {
    %c0 = arith.constant 0 : index
    %c0_0 = arith.constant 0 : index
    %0 = vector.load %arg1[%c0, %c0_0] : memref<16x128xbf16, #tpu.memory_space<vmem>>, vector<16x128xbf16>
    %1 = arith.extf %0 : vector<16x128xbf16> to vector<16x128xf32>
    %c0_1 = arith.constant 0 : index
    %c0_2 = arith.constant 0 : index
    %2 = vector.load %arg3[%c0_1, %c0_2] : memref<1x128xf32, #tpu.memory_space<vmem>>, vector<1x128xf32>
    %3 = vector.broadcast %2 : vector<1x128xf32> to vector<16x128xf32>
    %4 = arith.addf %1, %3 : vector<16x128xf32>
    %c0_3 = arith.constant 0 : index
    %c0_4 = arith.constant 0 : index
    %5 = vector.load %arg2[%c0_3, %c0_4] : memref<16x1xi32, #tpu.memory_space<vmem>>, vector<16x1xi32>
    %cst = arith.constant dense<0xFF800000> : vector<16xf32>
    %6 = vector.multi_reduction <maximumf>, %4, %cst [1] : vector<16x128xf32> to vector<16xf32>
    %7 = vector.shape_cast %6 : vector<16xf32> to vector<16x1xf32>
    %8 = vector.broadcast %7 : vector<16x1xf32> to vector<16x128xf32>
    %9 = arith.subf %4, %8 : vector<16x128xf32>
    %10 = math.exp %9 : vector<16x128xf32>
    %cst_5 = arith.constant dense<0.000000e+00> : vector<16xf32>
    %11 = vector.multi_reduction <add>, %10, %cst_5 [1] : vector<16x128xf32> to vector<16xf32>
    %12 = vector.shape_cast %11 : vector<16xf32> to vector<16x1xf32>
    %13 = math.log %12 : vector<16x1xf32>
    %14 = vector.broadcast %13 : vector<16x1xf32> to vector<16x128xf32>
    %15 = arith.subf %9, %14 : vector<16x128xf32>
    %16 = tpu.iota {dimensions = array<i32: 1>} : vector<16x128xi32>
    %17 = tpu.iota {dimensions = array<i32: 0>} : vector<16x128xi32>
    %c16_i32 = arith.constant 16 : i32
    %18 = arith.muli %arg0, %c16_i32 : i32
    %19 = vector.broadcast %18 : i32 to vector<16x128xi32>
    %20 = arith.addi %19, %17 : vector<16x128xi32>
    %c60_i32 = arith.constant 60 : i32
    %21 = vector.broadcast %c60_i32 : i32 to vector<16x128xi32>
    %22 = arith.cmpi slt, %20, %21 : vector<16x128xi32>
    %23 = vector.broadcast %5 : vector<16x1xi32> to vector<16x128xi32>
    %24 = arith.cmpi eq, %16, %23 : vector<16x128xi32>
    %25 = arith.andi %24, %22 : vector<16x128xi1>
    %cst_6 = arith.constant 0.000000e+00 : f32
    %26 = vector.broadcast %cst_6 : f32 to vector<16x128xf32>
    %27 = arith.subf %26, %15 : vector<16x128xf32>
    %cst_7 = arith.constant 0.000000e+00 : f32
    %28 = vector.broadcast %cst_7 : f32 to vector<16x128xf32>
    %29 = arith.select %25, %27, %28 : vector<16x128xi1>, vector<16x128xf32>
    %cst_8 = arith.constant dense<0.000000e+00> : vector<128xf32>
    %30 = vector.multi_reduction <add>, %29, %cst_8 [0] : vector<16x128xf32> to vector<128xf32>
    %31 = vector.shape_cast %30 : vector<128xf32> to vector<1x128xf32>
    %32 = vector.shape_cast %31 : vector<1x128xf32> to vector<1x1x128xf32>
    %c0_9 = arith.constant 0 : index
    %c0_10 = arith.constant 0 : index
    %c0_11 = arith.constant 0 : index
    %33 = vector.load %arg4[%c0_9, %c0_10, %c0_11] : memref<1x1x128xf32, #tpu.memory_space<vmem>>, vector<1x1x128xf32>
    tpu.vector_store %arg4[%c0_9, %c0_10, %c0_11], %32 {strides = array<i32>} : memref<1x1x128xf32, #tpu.memory_space<vmem>>, vector<1x1x128xf32>,
    return
  }
  func.func @transform_0(%arg0: i32) -> (i32, i32) {
    %c0_i32 = arith.constant 0 : i32
    %c0_i32_0 = arith.constant 0 : i32
    return %arg0, %c0_i32 : i32, i32
  }
  func.func @transform_1(%arg0: i32) -> (i32, i32) {
    %c0_i32 = arith.constant 0 : i32
    %c0_i32_0 = arith.constant 0 : i32
    return %arg0, %c0_i32 : i32, i32
  }
  func.func @transform_2(%arg0: i32) -> (i32, i32) {
    %c0_i32 = arith.constant 0 : i32
    %c0_i32_0 = arith.constant 0 : i32
    %c0_i32_1 = arith.constant 0 : i32
    return %c0_i32, %c0_i32_0 : i32, i32
  }
  func.func @transform_3(%arg0: i32) -> (i32, i32, i32) {
    %c0_i32 = arith.constant 0 : i32
    %c0_i32_0 = arith.constant 0 : i32
    %c0_i32_1 = arith.constant 0 : i32
    return %arg0, %c0_i32, %c0_i32_0 : i32, i32, i32
  }
}

</mosaic_0001>

<llo_original>
// kernel: tpu_custom_call.1
$region0: #{tpu_custom_call.1}
  #allocation0 [shape = 'u32[]', space=smem, size = 0x4, offset = 0x4, fixed_abs, tag = 'smem constant byte address 0x4 - core index']
  #allocation1 [shape = 'u32[144,128]{1,0:T(1,128)}', space=vmem, size = 0x12000, scoped, tag = 'internal scratch']
  %s0 = inlined_call_operand.vmem [shape: bf16[60,128], index: 0, kind: input, shape index: {}]
  %s1 = inlined_call_operand.vmem [shape: s32[60,1], index: 1, kind: input, shape index: {}]
  %s2 = inlined_call_operand.vmem [shape: f32[1,128], index: 2, kind: input, shape index: {}]
  %s3 = inlined_call_operand.hbm [shape: f32[4,1,128], index: 3, kind: output, shape index: {}]
  %s4 = sld [smem:[#allocation0]]
  $region45: #{tpu_custom_call.1} parent=0
    _
  %s6 = ssub.s32 1, %s4
  %s7 = scalar_select 0, %s6, %s4
  $region1: #{tpu_custom_call.1} parent=0
    #allocation2 [shape = 'u8[1024]{0}', space=vmem, size = 0x400, scoped, tag = 'output window, operand 0']
    #allocation3 [shape = 's32[2]{0}', space=sflag, size = 0x8, scoped, tag = 'scoped memory for tpu_custom_call.1']
    %8 = vsyncpa [#allocation3], 0
    %s9 = scalar_lea.sflag [#allocation3], 1
    %10 = vsyncpa %s9, 0
    loop: start=0, step=1, limit=6
    $region2: #{tpu_custom_call.1} parent=1 // loop_pre_header
      _
    $region3: #{tpu_custom_call.1} parent=1 // loop_header
      %s12 = sphi 0, %s16
      %p13 = scmp.ge.s32.totalorder %s12, 6
      %s22 = sphi 0, %s24
      %s25 = sphi 0, %s22
      %s26 = sphi 0, %s25
      %s42 = sphi 0, %s26
      %s48 = sphi 0, %s50
      %s51 = sphi 0, %s48
      %s52 = sphi 0, %s51
      %s68 = sphi 0, %s52
      %s72 = sphi 0, %s72
      %s74 = sphi 0, %s72
      %s75 = sphi 0, %s74
      %s89 = sphi 0, %s75
      %s95 = sphi 0, %s97
      %s98 = sphi 0, %s95
      %s99 = sphi 0, %s98
      %s115 = sphi 0, %s99
    $region4: #{tpu_custom_call.1} parent=1 // loop_header_branch
      %15 = sbr.rel (%p13) target = $region8
    $region5: #{tpu_custom_call.1} parent=1 // loop_body
      %s17 = ssub.s32 %s12, 1
      %s18 = ssub.s32 %s12, 2
      %s19 = sadd.s32 %s12, 1
      %s20 = ssub.s32 %s12, %s19
      %p21 = scmp.eq.s32.totalorder %s20, 0
      %s23 = sadd.s32 %s22, 1
      %s24 = scalar_select %p21, %s22, %s23
      %p27 = pneg %p21
      %p28 = scmp.eq.s32.totalorder %s12, 3
      %p29 = por %p27, %p28
      %p30 = scmp.ne.s32.totalorder %s22, %s25
      %p31 = scmp.eq.s32.totalorder %s12, 0
      %p32 = por %p30, %p31
      %p33 = scmp.ne.s32.totalorder %s22, %s25
      %p34 = scmp.eq.s32.totalorder %s17, 3
      %p35 = por %p33, %p34
      %p36 = scmp.ne.s32.totalorder %s25, %s26
      %p37 = scmp.eq.s32.totalorder %s17, 0
      %p38 = por %p36, %p37
      %p39 = scmp.ne.s32.totalorder %s25, %s26
      %p40 = scmp.eq.s32.totalorder %s18, 3
      %p41 = por %p39, %p40
      %p43 = scmp.ne.s32.totalorder %s26, %s42
      %p44 = scmp.eq.s32.totalorder %s18, 0
      %p45 = por %p43, %p44
      %s46 = ssub.s32 %s12, %s19
      %p47 = scmp.eq.s32.totalorder %s46, 0
      %s49 = sadd.s32 %s48, 1
      %s50 = scalar_select %p47, %s48, %s49
      %p53 = pneg %p47
      %p54 = scmp.eq.s32.totalorder %s12, 3
      %p55 = por %p53, %p54
      %p56 = scmp.ne.s32.totalorder %s48, %s51
      %p57 = scmp.eq.s32.totalorder %s12, 0
      %p58 = por %p56, %p57
      %p59 = scmp.ne.s32.totalorder %s48, %s51
      %p60 = scmp.eq.s32.totalorder %s17, 3
      %p61 = por %p59, %p60
      %p62 = scmp.ne.s32.totalorder %s51, %s52
      %p63 = scmp.eq.s32.totalorder %s17, 0
      %p64 = por %p62, %p63
      %p65 = scmp.ne.s32.totalorder %s51, %s52
      %p66 = scmp.eq.s32.totalorder %s18, 3
      %p67 = por %p65, %p66
      %p69 = scmp.ne.s32.totalorder %s52, %s68
      %p70 = scmp.eq.s32.totalorder %s18, 0
      %p71 = por %p69, %p70
      %s73 = sadd.s32 %s72, 1
      %p76 = scmp.eq.s32.totalorder %s12, 3
      %p77 = scmp.ne.s32.totalorder %s72, %s74
      %p78 = scmp.eq.s32.totalorder %s12, 0
      %p79 = por %p77, %p78
      %p80 = scmp.ne.s32.totalorder %s72, %s74
      %p81 = scmp.eq.s32.totalorder %s17, 3
      %p82 = por %p80, %p81
      %p83 = scmp.ne.s32.totalorder %s74, %s75
      %p84 = scmp.eq.s32.totalorder %s17, 0
      %p85 = por %p83, %p84
      %p86 = scmp.ne.s32.totalorder %s74, %s75
      %p87 = scmp.eq.s32.totalorder %s18, 3
      %p88 = por %p86, %p87
      %p90 = scmp.ne.s32.totalorder %s75, %s89
      %p91 = scmp.eq.s32.totalorder %s18, 0
      %p92 = por %p90, %p91
      %s93 = ssub.s32 %s12, %s19
      %p94 = scmp.eq.s32.totalorder %s93, 0
      %s96 = sadd.s32 %s95, 1
      %s97 = scalar_select %p94, %s95, %s96
      %p100 = pneg %p94
      %p101 = scmp.eq.s32.totalorder %s12, 3
      %p102 = por %p100, %p101
      %p103 = scmp.ne.s32.totalorder %s95, %s98
      %p104 = scmp.eq.s32.totalorder %s12, 0
      %p105 = por %p103, %p104
      %p106 = scmp.ne.s32.totalorder %s95, %s98
      %p107 = scmp.eq.s32.totalorder %s17, 3
      %p108 = por %p106, %p107
      %p109 = scmp.ne.s32.totalorder %s98, %s99
      %p110 = scmp.eq.s32.totalorder %s17, 0
      %p111 = por %p109, %p110
      %p112 = scmp.ne.s32.totalorder %s98, %s99
      %p113 = scmp.eq.s32.totalorder %s18, 3
      %p114 = por %p112, %p113
      %p116 = scmp.ne.s32.totalorder %s99, %s115
      %p117 = scmp.eq.s32.totalorder %s18, 0
      %p118 = por %p116, %p117
      %p119 = scmp.le.s32.totalorder 1, %s12
      %p120 = scmp.lt.s32.totalorder %s12, 5
      %p121 = pnand %p119, %p120
      %p122 = pneg %p121
      // Predicated region
      $region9: #{tpu_custom_call.1} parent=5 // pred_check
        _
      $region10: #{tpu_custom_call.1} parent=5 // pred_check_branch
        %124 = sbr.rel (%p121) target = $region12
      $region11: #{tpu_custom_call.1} parent=5 // pred_region
        %s125 = ssub.s32 %s12, 1
        // Predicated region
        $region13: #{tpu_custom_call.1} parent=11 // pred_check
          %p126 = pneg %p85
        $region14: #{tpu_custom_call.1} parent=11 // pred_check_branch
          %128 = sbr.rel (%p126) target = $region16
        $region15: #{tpu_custom_call.1} parent=11 // pred_region
          _
        $region16: #{tpu_custom_call.1} parent=11 // pred_fallthru
          _
      $region12: #{tpu_custom_call.1} parent=5 // pred_fallthru
        _
      %p129 = scmp.lt.s32.totalorder %s12, 4
      // Predicated region
      $region17: #{tpu_custom_call.1} parent=5 // pred_check
        %p130 = pneg %p129
      $region18: #{tpu_custom_call.1} parent=5 // pred_check_branch
        %132 = sbr.rel (%p130) target = $region20
      $region19: #{tpu_custom_call.1} parent=5 // pred_region
        // Predicated region
        $region21: #{tpu_custom_call.1} parent=19 // pred_check
          %p133 = pneg %p32
        $region22: #{tpu_custom_call.1} parent=19 // pred_check_branch
          %135 = sbr.rel (%p133) target = $region24
        $region23: #{tpu_custom_call.1} parent=19 // pred_region
          %s136 = smul.u32 2, %s12
          %p137 = scmp.lt.s32.totalorder %s136, 7
          %s138 = scalar_select %p137, %s136, 7
          %s139 = smul.addr %s138, 4
          %s140 = scalar_lea.vmem %s0, %s139
          %s141 = smul.u32 2, %s12
        $region24: #{tpu_custom_call.1} parent=19 // pred_fallthru
          _
        // Predicated region
        $region25: #{tpu_custom_call.1} parent=19 // pred_check
          %p142 = pneg %p58
        $region26: #{tpu_custom_call.1} parent=19 // pred_check_branch
          %144 = sbr.rel (%p142) target = $region28
        $region27: #{tpu_custom_call.1} parent=19 // pred_region
          %s145 = smul.u32 2, %s12
          %p146 = scmp.lt.s32.totalorder %s145, 7
          %s147 = scalar_select %p146, %s145, 7
          %s148 = smul.addr %s147, 8
          %s149 = scalar_lea.vmem %s1, %s148
          %s150 = smul.u32 2, %s12
        $region28: #{tpu_custom_call.1} parent=19 // pred_fallthru
          _
      $region20: #{tpu_custom_call.1} parent=5 // pred_fallthru
        _
      %p151 = scmp.le.s32.totalorder 1, %s12
      %p152 = scmp.lt.s32.totalorder %s12, 5
      %p153 = pnand %p151, %p152
      %p154 = pneg %p153
      // Predicated region
      $region29: #{tpu_custom_call.1} parent=5 // pred_check
        _
      $region30: #{tpu_custom_call.1} parent=5 // pred_check_branch
        %156 = sbr.rel (%p153) target = $region32
      $region31: #{tpu_custom_call.1} parent=5 // pred_region
        %s157 = ssub.s32 %s12, 1
        %s158 = smul.u32 2, %s17
        %p159 = scmp.lt.s32.totalorder %s158, 7
        %s160 = scalar_select %p159, %s158, 7
        %s161 = smul.addr %s160, 4
        %s162 = scalar_lea.vmem %s0, %s161
        %p163 = pneg %p38
        %p164 = pneg %p35
        %s165 = smul.u32 2, %s17
        %p166 = scmp.lt.s32.totalorder %s165, 7
        %s167 = scalar_select %p166, %s165, 7
        %s168 = smul.addr %s167, 8
        %s169 = scalar_lea.vmem %s1, %s168
        %p170 = pneg %p64
        %p171 = pneg %p61
        %p172 = pneg %p85
        %p173 = pneg %p82
        %p174 = pneg %p111
        %p175 = pneg %p108
        %s176 = sand.u32 %s98, 1
        %s177 = scalar_lea.sflag [#allocation3], %s176
        %s178 = sand.u32 %s98, 1
        %s179 = scalar_lea.vmem [#allocation2], %s178
        %s180 = smul.u32 2, %s17
        %p181 = scmp.lt.s32.totalorder %s180, 7
        %s182 = scalar_select %p181, %s180, 7
        %s183 = smul.addr %s182, 4
        %s184 = scalar_lea.vmem %s0, %s183
        %s185 = smul.u32 2, %s17
        %s186 = smul.u32 2, %s17
        %p187 = scmp.lt.s32.totalorder %s186, 7
        %s188 = scalar_select %p187, %s186, 7
        %s189 = smul.addr %s188, 8
        %s190 = scalar_lea.vmem %s1, %s189
        %s191 = smul.u32 2, %s17
        %v192 = vld [vmem:[%s184] sm:$0xf]
        %v193 = vld [vmem:[%s184 + $0x4] sm:$0xf]
        %v194 = vunpack.c.l.bf16 %v192
        %v195 = vunpack.c.l.bf16 %v193
        %v196 = vld [vmem:[%s2] sm:$0x1]
        %v198 = vlaneseq
        %v199 = vshrl.u32 %v198, 7
        %v200 = vsub.s32 0, %v199
        %v201 = vrot.slane %v196, %v200
        %v203 = vadd.f32 %v194, %v201
        %v204 = vadd.f32 %v195, %v201
        %v205 = vld [vmem:[%s190] sm:$0xff]
        %v206 = vld [vmem:[%s190 + $0x8] sm:$0xff]
        %207 = vmax.xlane.f32.xlu0 %v203
        %v208 = vpop.xlane.xlu0 %207
        %209 = vmax.xlane.f32.xlu0 %v204
        %v210 = vpop.xlane.xlu0 %209
        %v211 = vsub.f32 %v203, %v208
        %v212 = vsub.f32 %v204, %v210
        %v213 = vmul.f32 %v211, 1.442695
        %v214 = vpow.pop %v213
        %v215 = vmul.f32 %v212, 1.442695
        %v216 = vpow.pop %v215
        %217 = vadd.xlane.f32.xlu0 %v214
        %v218 = vpop.xlane.xlu0 %217
        %219 = vadd.xlane.f32.xlu0 %v216
        %v220 = vpop.xlane.xlu0 %219
        %v221 = vlog2.pop %v218
        %v222 = vmul.f32 %v221, 0.6931472
        %v223 = vlog2.pop %v220
        %v224 = vmul.f32 %v223, 0.6931472
        %v225 = vsub.f32 %v211, %v222
        %v226 = vsub.f32 %v212, %v224
        %v227 = vlaneseq
        %v228 = vand.u32 %v227, 127
        %v229 = vlaneseq
        %v230 = vshrl.u32 %v229, 7
        %v231 = vadd.s32 %v230, 8
        %s232 = smul.u32 %s17, 16
        %v233 = vstv %s232
        %v234 = vadd.s32 %v233, %v230
        %v235 = vadd.s32 %v233, %v231
        %vm236 = vcmp.lt.s32.totalorder %v234, 60
        %vm237 = vcmp.lt.s32.totalorder %v235, 60
        %238 = vset.pattern.permute.xlu0 0
        %239 = vperm.xlu0 %238, %v205
        %v240 = vpop.permute.xlu0 %239
        %241 = vset.pattern.permute.xlu0 0
        %242 = vperm.xlu0 %241, %v206
        %v243 = vpop.permute.xlu0 %242
        %vm244 = vcmp.eq.s32.totalorder %v228, %v240
        %vm245 = vcmp.eq.s32.totalorder %v228, %v243
        %vm246 = vmand %vm244, %vm236
        %vm247 = vmand %vm245, %vm237
        %v248 = vsub.f32 0.0, %v225
        %v249 = vsub.f32 0.0, %v226
        %v250 = vsel %vm246, %v248, 0.0
        %v251 = vsel %vm247, %v249, 0.0
        %v252 = vadd.f32 %v250, %v251
        %v253 = vrot.slane %v252, 4
        %v254 = vadd.f32 %v252, %v253
        %v255 = vrot.slane %v254, 2
        %v256 = vadd.f32 %v254, %v255
        %v257 = vrot.slane %v256, 1
        %v258 = vadd.f32 %v256, %v257
        %259 = vst [vmem:[%s179] sm:$0x1] %v258
        %s260 = sand.u32 %s98, 1
        %s261 = scalar_lea.sflag [#allocation3], %s260
        %s262 = sand.u32 %s98, 1
        %s263 = scalar_lea.vmem [#allocation2], %s262
        // Predicated region
        $region33: #{tpu_custom_call.1} parent=31 // pred_check
          %p264 = pneg %p108
        $region34: #{tpu_custom_call.1} parent=31 // pred_check_branch
          %266 = sbr.rel (%p264) target = $region36
        $region35: #{tpu_custom_call.1} parent=31 // pred_region
          %s268 = ssub.s32 16, 16
          %269 = vsyncadd %s261, %s268
          %s270 = smul.addr %s17, 16
          %s271 = scalar_lea.hbm %s3, %s270
          %s273 = sshll.u32 %s263, 4
          %s274 = int_to_ptr.vmem [resolvable:$true] %s273
          %276 = dma.vmem_to_hbm [thread:$0]  %s274, 16, %s271, %s261
        $region36: #{tpu_custom_call.1} parent=31 // pred_fallthru
          _
      $region32: #{tpu_custom_call.1} parent=5 // pred_fallthru
        _
      %p277 = scmp.le.s32.totalorder 2, %s12
      // Predicated region
      $region37: #{tpu_custom_call.1} parent=5 // pred_check
        %p278 = pneg %p277
      $region38: #{tpu_custom_call.1} parent=5 // pred_check_branch
        %280 = sbr.rel (%p278) target = $region40
      $region39: #{tpu_custom_call.1} parent=5 // pred_region
        %s281 = ssub.s32 %s12, 2
        // Predicated region
        $region41: #{tpu_custom_call.1} parent=39 // pred_check
          %p282 = pneg %p114
        $region42: #{tpu_custom_call.1} parent=39 // pred_check_branch
          %284 = sbr.rel (%p282) target = $region44
        $region43: #{tpu_custom_call.1} parent=39 // pred_region
          %s285 = sand.u32 %s99, 1
          %s286 = scalar_lea.sflag [#allocation3], %s285
          %s287 = sand.u32 %s99, 1
          %s288 = scalar_lea.vmem [#allocation2], %s287
          %289 = dma.done %s286, 16
        $region44: #{tpu_custom_call.1} parent=39 // pred_fallthru
          _
      $region40: #{tpu_custom_call.1} parent=5 // pred_fallthru
        _
    $region6: #{tpu_custom_call.1} parent=1 // loop_footer
      %s16 = sadd.s32 1, %s12
    $region7: #{tpu_custom_call.1} parent=1 // loop_footer_branch
      %11 = sbr.rel target = $region3
    $region8: #{tpu_custom_call.1} parent=1 // loop_exit
      _
    %290 = vsyncpa [#allocation3], 1
    %s291 = scalar_lea.sflag [#allocation3], 1
    %292 = vsyncpa %s291, 1

</llo_original>
